<compile_context>
chip_gen: v5e
topology: v5e:2x2
jax: 0.10.0
libtpu: 0.0.40
codegen_flags: <defaults>
</compile_context>

<pallas_src>
import jax
import jax.numpy as jnp
from jax.experimental import pallas as pl
from jax.experimental.pallas import tpu as pltpu


# Row indices inside the packed "vec" parameter buffer.
_V_LN1_G, _V_LN1_B = 0, 1
_V_FF_B1, _V_FF_B2 = 2, 3
_V_LN2_G, _V_LN2_B = 4, 5
_V_DEC_B = 6
_V_MLP_B1, _V_MLP_W2, _V_MLP_B2 = 7, 8, 9
_N_VEC = 10


def _layer_norm(x, gamma, beta, eps=1e-5):
    mean = jnp.mean(x, axis=-1, keepdims=True)
    var = jnp.mean((x - mean) ** 2, axis=-1, keepdims=True)
    return (x - mean) * jax.lax.rsqrt(var + eps) * gamma + beta


def make_critic_kernel(n_heads, batch, seq):
    def critic_kernel(x_ref, wqkv_ref, wo_ref, ffw1_ref, ffw2_ref,
                      wdec_ref, mlpw1_ref, vec_ref, out_ref):
        B, N = batch, seq
        BN, D = x_ref.shape
        H = ffw1_ref.shape[1]
        Dh = wdec_ref.shape[1]
        dk = D // n_heads
        scale = 1.0 / jnp.sqrt(jnp.float32(dk))

        xf = x_ref[...]                       # (B*N, D) f32, lane-dense
        vec = vec_ref[...]                    # (10, max(D, H)) packed small params
        wo = wo_ref[...]                      # (D, D)

        # ---------------- Multi-head self-attention ----------------
        # Single fused QKV projection: (BN, D) @ (D, 3D).
        qkv = jnp.dot(xf, wqkv_ref[...], preferred_element_type=jnp.float32)

        attn = jnp.zeros((BN, D), dtype=jnp.float32)
        for h in range(n_heads):              # static unroll over heads
            lo, hi = h * dk, (h + 1) * dk
            qh = qkv[:, lo:hi].reshape(B, N, dk)
            kh = qkv[:, D + lo:D + hi].reshape(B, N, dk)
            vh = qkv[:, 2 * D + lo:2 * D + hi].reshape(B, N, dk)
            s = jnp.einsum('bqd,bkd->bqk', qh, kh,
                           preferred_element_type=jnp.float32) * scale
            s = s - jnp.max(s, axis=-1, keepdims=True)
            p = jnp.exp(s)
            # EUP reciprocal instead of a VALU divide sequence.
            p = p * pl.reciprocal(jnp.sum(p, axis=-1, keepdims=True), approx=True)
            hd = jnp.einsum('bqk,bkd->bqd', p, vh,
                            preferred_element_type=jnp.float32)       # (B, N, dk)
            # sum_h (hd_h @ wo[h*dk:(h+1)*dk, :]) == concat(heads) @ wo
            attn = attn + jnp.dot(hd.reshape(BN, dk), wo[lo:hi, :],
                                  preferred_element_type=jnp.float32)

        # skip connection + LayerNorm
        h1 = _layer_norm(xf + attn,
                         vec[_V_LN1_G:_V_LN1_G + 1, :D],
                         vec[_V_LN1_B:_V_LN1_B + 1, :D])

        # ---------------- Feed-forward sublayer (2-D matmuls) ----------------
        f = jnp.dot(h1, ffw1_ref[...], preferred_element_type=jnp.float32)
        f = jnp.maximum(f + vec[_V_FF_B1:_V_FF_B1 + 1, :H], 0.0)
        f = jnp.dot(f, ffw2_ref[...], preferred_element_type=jnp.float32)
        f = f + vec[_V_FF_B2:_V_FF_B2 + 1, :D]
        h2 = _layer_norm(h1 + f,
                         vec[_V_LN2_G:_V_LN2_G + 1, :D],
                         vec[_V_LN2_B:_V_LN2_B + 1, :D])

        # ---------------- Value decoder ----------------
        # mean commutes with the linear node projection:
        #   mean_n(h2 @ Wn + bn + graph @ Wg + bg) == graph @ (Wg + Wn) + (bg + bn)
        graph = jnp.mean(h2.reshape(B, N, D), axis=1)                   # (B, D)
        fused = jnp.dot(graph, wdec_ref[...],
                        preferred_element_type=jnp.float32)
        fused = fused + vec[_V_DEC_B:_V_DEC_B + 1, :Dh]                  # (B, D/2)

        m = jnp.dot(fused, mlpw1_ref[...],
                    preferred_element_type=jnp.float32)
        m = jnp.maximum(m + vec[_V_MLP_B1:_V_MLP_B1 + 1, :D], 0.0)       # (B, D)
        val = jnp.sum(m * vec[_V_MLP_W2:_V_MLP_W2 + 1, :D],
                      axis=-1, keepdims=True)
        out_ref[...] = val + vec[_V_MLP_B2:_V_MLP_B2 + 1, 0:1]           # (B, 1)

    return critic_kernel


def init_params(key, embedding_dim, hidden_dim):
    """Deterministic PyTorch-Linear-style init (uniform +- 1/sqrt(fan_in))."""
    D = 2 * embedding_dim
    H = 2 * hidden_dim
    Dh = D // 2

    def linear(k, fan_in, shape):
        bound = 1.0 / jnp.sqrt(jnp.float32(fan_in))
        return jax.random.uniform(k, shape, jnp.float32, -bound, bound)

    ks = jax.random.split(key, 16)
    params = [
        linear(ks[0], D, (D, D)),          # wq
        linear(ks[1], D, (D, D)),          # wk
        linear(ks[2], D, (D, D)),          # wv
        linear(ks[3], D, (D, D)),          # wo
        jnp.ones((1, D), jnp.float32),     # ln1 gamma
        jnp.zeros((1, D), jnp.float32),    # ln1 beta
        linear(ks[4], D, (D, H)),          # ff_w1
        linear(ks[5], D, (1, H)),          # ff_b1
        linear(ks[6], H, (H, D)),          # ff_w2
        linear(ks[7], H, (1, D)),          # ff_b2
        jnp.ones((1, D), jnp.float32),     # ln2 gamma
        jnp.zeros((1, D), jnp.float32),    # ln2 beta
        linear(ks[8], D, (D, Dh)),         # project_graph W
        linear(ks[9], D, (1, Dh)),         # project_graph b
        linear(ks[10], D, (D, Dh)),        # project_node W
        linear(ks[11], D, (1, Dh)),        # project_node b
        linear(ks[12], Dh, (Dh, D)),       # MLP layer-1 W
        linear(ks[13], Dh, (1, D)),        # MLP layer-1 b
        linear(ks[14], D, (1, D)),         # MLP layer-2 W (row-wise, (1, D))
        linear(ks[15], D, (1, 1)),         # MLP layer-2 b
    ]
    return params


def pack_params(params):
    """Pack torch-style params into the kernel's 7 consolidated buffers."""
    (wq, wk, wv, wo, ln1_g, ln1_b, ff_w1, ff_b1, ff_w2, ff_b2,
     ln2_g, ln2_b, wg, bg, wn, bn, mlp_w1, mlp_b1, mlp_w2, mlp_b2) = params
    D = wq.shape[0]
    H = ff_w1.shape[1]
    width = max(D, H)

    def row(v):
        v = v.reshape(-1).astype(jnp.float32)
        return jnp.pad(v, (0, width - v.shape[0]))

    vec = jnp.stack([
        row(ln1_g), row(ln1_b),
        row(ff_b1), row(ff_b2),
        row(ln2_g), row(ln2_b),
        row(bg + bn),                       # combined decoder bias
        row(mlp_b1), row(mlp_w2), row(mlp_b2),
    ], axis=0)                              # (10, width)

    w_qkv = jnp.concatenate([wq, wk, wv], axis=1)    # (D, 3D)
    w_dec = wg + wn                                  # (D, D/2) combined decoder weight
    return (w_qkv, wo, ff_w1, ff_w2, w_dec, mlp_w1, vec)


def critic_forward(inputs, packed, n_heads):
    # Glue: concat the input tuple on the feature axis (+ detach), flatten to a
    # lane-dense (B*N, D) slab for the kernel.
    h_features = jax.lax.stop_gradient(jnp.concatenate(inputs, axis=-1))
    B, N, D = h_features.shape
    xf = h_features.reshape(B * N, D)

    kernel = make_critic_kernel(n_heads, B, N)
    n_in = 1 + len(packed)
    out = pl.pallas_call(
        kernel,
        out_shape=jax.ShapeDtypeStruct((B, 1), jnp.float32),
        in_specs=[pl.BlockSpec(memory_space=pltpu.MemorySpace.VMEM)] * n_in,
        out_specs=pl.BlockSpec(memory_space=pltpu.MemorySpace.VMEM),
    )(xf, *packed)

    baseline_value = out[:, 0]  # .squeeze() of (B, 1) -> (B,)
    return jax.lax.stop_gradient(baseline_value), baseline_value


if __name__ == "__main__":
    # Config consistent with the module:
    #   embedding_dim=16 -> D = 32, hidden_dim=32 -> H = 64, n_heads=4, n_layers=1
    #   exp_encoder='attention', normalization='layer'
    B, N = 2, 8
    embedding_dim, hidden_dim, n_heads = 16, 32, 4

    key = jax.random.PRNGKey(0)
    k_in1, k_in2, k_par = jax.random.split(key, 3)
    # `input` to Critic.forward is a tuple of feature tensors concatenated on dim -1.
    inp0 = jax.random.normal(k_in1, (B, N, embedding_dim), jnp.float32)
    inp1 = jax.random.normal(k_in2, (B, N, embedding_dim), jnp.float32)

    params = init_params(k_par, embedding_dim, hidden_dim)
    packed = pack_params(params)   # pack once; per-call path uses 8 DMAs not 22

    detached_value, value = critic_forward((inp0, inp1), packed, n_heads)
    jax.block_until_ready((detached_value, value))

    assert detached_value.shape == (B,) and value.shape == (B,)
    assert bool(jnp.all(jnp.isfinite(value)))
    print("KERNEL_OK")
</pallas_src>

<mosaic_0001>
module attributes {stable_mosaic.version = 11 : i64} {
  func.func @critic_kernel(%arg0: memref<16x32xf32, #tpu.memory_space<vmem>>, %arg1: memref<32x96xf32, #tpu.memory_space<vmem>>, %arg2: memref<32x32xf32, #tpu.memory_space<vmem>>, %arg3: memref<32x64xf32, #tpu.memory_space<vmem>>, %arg4: memref<64x32xf32, #tpu.memory_space<vmem>>, %arg5: memref<32x16xf32, #tpu.memory_space<vmem>>, %arg6: memref<16x32xf32, #tpu.memory_space<vmem>>, %arg7: memref<10x64xf32, #tpu.memory_space<vmem>>, %arg8: memref<2x1xf32, #tpu.memory_space<vmem>>) attributes {dimension_semantics = [], scalar_prefetch = 0 : i64, scratch_operands = 0 : i64, tpu.core_type = #tpu.core_type<tc>} {
    %cst = arith.constant 8.000000e+00 : f32
    %0 = math.sqrt %cst : f32
    %cst_0 = arith.constant 1.000000e+00 : f32
    %1 = arith.divf %cst_0, %0 : f32
    %c0 = arith.constant 0 : index
    %c0_1 = arith.constant 0 : index
    %2 = vector.load %arg0[%c0, %c0_1] : memref<16x32xf32, #tpu.memory_space<vmem>>, vector<16x32xf32>
    %c0_2 = arith.constant 0 : index
    %c0_3 = arith.constant 0 : index
    %3 = vector.load %arg7[%c0_2, %c0_3] : memref<10x64xf32, #tpu.memory_space<vmem>>, vector<10x64xf32>
    %c0_4 = arith.constant 0 : index
    %c0_5 = arith.constant 0 : index
    %4 = vector.load %arg2[%c0_4, %c0_5] : memref<32x32xf32, #tpu.memory_space<vmem>>, vector<32x32xf32>
    %c0_6 = arith.constant 0 : index
    %c0_7 = arith.constant 0 : index
    %5 = vector.load %arg1[%c0_6, %c0_7] : memref<32x96xf32, #tpu.memory_space<vmem>>, vector<32x96xf32>
    %cst_8 = arith.constant dense<0.000000e+00> : vector<16x96xf32>
    %6 = tpu.matmul %2, %5, %cst_8 {dimension_numbers = #tpu.dot_dimension_numbers<[1], [0], [0], [1], [0, 0, 1, 1], [], []>} : vector<16x32xf32>, vector<32x96xf32>, vector<16x96xf32> -> vector<16x96xf32>
    %cst_9 = arith.constant 0.000000e+00 : f32
    %7 = vector.broadcast %cst_9 : f32 to vector<16x32xf32>
    %8 = vector.extract_strided_slice %6 {offsets = [0, 0], sizes = [16, 8], strides = [1, 1]} : vector<16x96xf32> to vector<16x8xf32>
    %9 = vector.shape_cast %8 : vector<16x8xf32> to vector<2x8x8xf32>
    %10 = vector.extract_strided_slice %6 {offsets = [0, 32], sizes = [16, 8], strides = [1, 1]} : vector<16x96xf32> to vector<16x8xf32>
    %11 = vector.shape_cast %10 : vector<16x8xf32> to vector<2x8x8xf32>
    %12 = vector.extract_strided_slice %6 {offsets = [0, 64], sizes = [16, 8], strides = [1, 1]} : vector<16x96xf32> to vector<16x8xf32>
    %13 = vector.shape_cast %12 : vector<16x8xf32> to vector<2x8x8xf32>
    "tpu.trace_start"() <{level = 10 : i32, message = "bqd,bkd->bqk"}> : () -> ()
    %cst_10 = arith.constant dense<0.000000e+00> : vector<2x8x8xf32>
    %14 = tpu.matmul %9, %11, %cst_10 {dimension_numbers = #tpu.dot_dimension_numbers<[2], [2], [1], [1], [0, 0, 0, 1, 1, 1], [0], [0]>} : vector<2x8x8xf32>, vector<2x8x8xf32>, vector<2x8x8xf32> -> vector<2x8x8xf32>
    "tpu.trace_stop"() : () -> ()
    %15 = vector.broadcast %1 : f32 to vector<2x8x8xf32>
    %16 = arith.mulf %14, %15 : vector<2x8x8xf32>
    %cst_11 = arith.constant dense<0xFF800000> : vector<2x8xf32>
    %17 = vector.multi_reduction <maximumf>, %16, %cst_11 [2] : vector<2x8x8xf32> to vector<2x8xf32>
    %18 = vector.shape_cast %17 : vector<2x8xf32> to vector<2x8x1xf32>
    %19 = vector.broadcast %18 : vector<2x8x1xf32> to vector<2x8x8xf32>
    %20 = arith.subf %16, %19 : vector<2x8x8xf32>
    %21 = math.exp %20 : vector<2x8x8xf32>
    %cst_12 = arith.constant dense<0.000000e+00> : vector<2x8xf32>
    %22 = vector.multi_reduction <add>, %21, %cst_12 [2] : vector<2x8x8xf32> to vector<2x8xf32>
    %23 = vector.shape_cast %22 : vector<2x8xf32> to vector<2x8x1xf32>
    %24 = tpu.reciprocal %23 {approx = true} : vector<2x8x1xf32> -> vector<2x8x1xf32>
    %25 = vector.broadcast %24 : vector<2x8x1xf32> to vector<2x8x8xf32>
    %26 = arith.mulf %21, %25 : vector<2x8x8xf32>
    "tpu.trace_start"() <{level = 10 : i32, message = "bqk,bkd->bqd"}> : () -> ()
    %cst_13 = arith.constant dense<0.000000e+00> : vector<2x8x8xf32>
    %27 = tpu.matmul %26, %13, %cst_13 {dimension_numbers = #tpu.dot_dimension_numbers<[2], [1], [1], [2], [0, 0, 0, 1, 1, 2], [0], [0]>} : vector<2x8x8xf32>, vector<2x8x8xf32>, vector<2x8x8xf32> -> vector<2x8x8xf32>
    "tpu.trace_stop"() : () -> ()
    %28 = vector.shape_cast %27 : vector<2x8x8xf32> to vector<16x8xf32>
    %29 = vector.extract_strided_slice %4 {offsets = [0, 0], sizes = [8, 32], strides = [1, 1]} : vector<32x32xf32> to vector<8x32xf32>
    %cst_14 = arith.constant dense<0.000000e+00> : vector<16x32xf32>
    %30 = tpu.matmul %28, %29, %cst_14 {dimension_numbers = #tpu.dot_dimension_numbers<[1], [0], [0], [1], [0, 0, 1, 1], [], []>} : vector<16x8xf32>, vector<8x32xf32>, vector<16x32xf32> -> vector<16x32xf32>
    %31 = arith.addf %7, %30 : vector<16x32xf32>
    %32 = vector.extract_strided_slice %6 {offsets = [0, 8], sizes = [16, 8], strides = [1, 1]} : vector<16x96xf32> to vector<16x8xf32>
    %33 = vector.shape_cast %32 : vector<16x8xf32> to vector<2x8x8xf32>
    %34 = vector.extract_strided_slice %6 {offsets = [0, 40], sizes = [16, 8], strides = [1, 1]} : vector<16x96xf32> to vector<16x8xf32>
    %35 = vector.shape_cast %34 : vector<16x8xf32> to vector<2x8x8xf32>
    %36 = vector.extract_strided_slice %6 {offsets = [0, 72], sizes = [16, 8], strides = [1, 1]} : vector<16x96xf32> to vector<16x8xf32>
    %37 = vector.shape_cast %36 : vector<16x8xf32> to vector<2x8x8xf32>
    "tpu.trace_start"() <{level = 10 : i32, message = "bqd,bkd->bqk"}> : () -> ()
    %cst_15 = arith.constant dense<0.000000e+00> : vector<2x8x8xf32>
    %38 = tpu.matmul %33, %35, %cst_15 {dimension_numbers = #tpu.dot_dimension_numbers<[2], [2], [1], [1], [0, 0, 0, 1, 1, 1], [0], [0]>} : vector<2x8x8xf32>, vector<2x8x8xf32>, vector<2x8x8xf32> -> vector<2x8x8xf32>
    "tpu.trace_stop"() : () -> ()
    %39 = vector.broadcast %1 : f32 to vector<2x8x8xf32>
    %40 = arith.mulf %38, %39 : vector<2x8x8xf32>
    %cst_16 = arith.constant dense<0xFF800000> : vector<2x8xf32>
    %41 = vector.multi_reduction <maximumf>, %40, %cst_16 [2] : vector<2x8x8xf32> to vector<2x8xf32>
    %42 = vector.shape_cast %41 : vector<2x8xf32> to vector<2x8x1xf32>
    %43 = vector.broadcast %42 : vector<2x8x1xf32> to vector<2x8x8xf32>
    %44 = arith.subf %40, %43 : vector<2x8x8xf32>
    %45 = math.exp %44 : vector<2x8x8xf32>
    %cst_17 = arith.constant dense<0.000000e+00> : vector<2x8xf32>
    %46 = vector.multi_reduction <add>, %45, %cst_17 [2] : vector<2x8x8xf32> to vector<2x8xf32>
    %47 = vector.shape_cast %46 : vector<2x8xf32> to vector<2x8x1xf32>
    %48 = tpu.reciprocal %47 {approx = true} : vector<2x8x1xf32> -> vector<2x8x1xf32>
    %49 = vector.broadcast %48 : vector<2x8x1xf32> to vector<2x8x8xf32>
    %50 = arith.mulf %45, %49 : vector<2x8x8xf32>
    "tpu.trace_start"() <{level = 10 : i32, message = "bqk,bkd->bqd"}> : () -> ()
    %cst_18 = arith.constant dense<0.000000e+00> : vector<2x8x8xf32>
    %51 = tpu.matmul %50, %37, %cst_18 {dimension_numbers = #tpu.dot_dimension_numbers<[2], [1], [1], [2], [0, 0, 0, 1, 1, 2], [0], [0]>} : vector<2x8x8xf32>, vector<2x8x8xf32>, vector<2x8x8xf32> -> vector<2x8x8xf32>
    "tpu.trace_stop"() : () -> ()
    %52 = vector.shape_cast %51 : vector<2x8x8xf32> to vector<16x8xf32>
    %53 = vector.extract_strided_slice %4 {offsets = [8, 0], sizes = [8, 32], strides = [1, 1]} : vector<32x32xf32> to vector<8x32xf32>
    %cst_19 = arith.constant dense<0.000000e+00> : vector<16x32xf32>
    %54 = tpu.matmul %52, %53, %cst_19 {dimension_numbers = #tpu.dot_dimension_numbers<[1], [0], [0], [1], [0, 0, 1, 1], [], []>} : vector<16x8xf32>, vector<8x32xf32>, vector<16x32xf32> -> vector<16x32xf32>
    %55 = arith.addf %31, %54 : vector<16x32xf32>
    %56 = vector.extract_strided_slice %6 {offsets = [0, 16], sizes = [16, 8], strides = [1, 1]} : vector<16x96xf32> to vector<16x8xf32>
    %57 = vector.shape_cast %56 : vector<16x8xf32> to vector<2x8x8xf32>
    %58 = vector.extract_strided_slice %6 {offsets = [0, 48], sizes = [16, 8], strides = [1, 1]} : vector<16x96xf32> to vector<16x8xf32>
    %59 = vector.shape_cast %58 : vector<16x8xf32> to vector<2x8x8xf32>
    %60 = vector.extract_strided_slice %6 {offsets = [0, 80], sizes = [16, 8], strides = [1, 1]} : vector<16x96xf32> to vector<16x8xf32>
    %61 = vector.shape_cast %60 : vector<16x8xf32> to vector<2x8x8xf32>
    "tpu.trace_start"() <{level = 10 : i32, message = "bqd,bkd->bqk"}> : () -> ()
    %cst_20 = arith.constant dense<0.000000e+00> : vector<2x8x8xf32>
    %62 = tpu.matmul %57, %59, %cst_20 {dimension_numbers = #tpu.dot_dimension_numbers<[2], [2], [1], [1], [0, 0, 0, 1, 1, 1], [0], [0]>} : vector<2x8x8xf32>, vector<2x8x8xf32>, vector<2x8x8xf32> -> vector<2x8x8xf32>
    "tpu.trace_stop"() : () -> ()
    %63 = vector.broadcast %1 : f32 to vector<2x8x8xf32>
    %64 = arith.mulf %62, %63 : vector<2x8x8xf32>
    %cst_21 = arith.constant dense<0xFF800000> : vector<2x8xf32>
    %65 = vector.multi_reduction <maximumf>, %64, %cst_21 [2] : vector<2x8x8xf32> to vector<2x8xf32>
    %66 = vector.shape_cast %65 : vector<2x8xf32> to vector<2x8x1xf32>
    %67 = vector.broadcast %66 : vector<2x8x1xf32> to vector<2x8x8xf32>
    %68 = arith.subf %64, %67 : vector<2x8x8xf32>
    %69 = math.exp %68 : vector<2x8x8xf32>
    %cst_22 = arith.constant dense<0.000000e+00> : vector<2x8xf32>
    %70 = vector.multi_reduction <add>, %69, %cst_22 [2] : vector<2x8x8xf32> to vector<2x8xf32>
    %71 = vector.shape_cast %70 : vector<2x8xf32> to vector<2x8x1xf32>
    %72 = tpu.reciprocal %71 {approx = true} : vector<2x8x1xf32> -> vector<2x8x1xf32>
    %73 = vector.broadcast %72 : vector<2x8x1xf32> to vector<2x8x8xf32>
    %74 = arith.mulf %69, %73 : vector<2x8x8xf32>
    "tpu.trace_start"() <{level = 10 : i32, message = "bqk,bkd->bqd"}> : () -> ()
    %cst_23 = arith.constant dense<0.000000e+00> : vector<2x8x8xf32>
    %75 = tpu.matmul %74, %61, %cst_23 {dimension_numbers = #tpu.dot_dimension_numbers<[2], [1], [1], [2], [0, 0, 0, 1, 1, 2], [0], [0]>} : vector<2x8x8xf32>, vector<2x8x8xf32>, vector<2x8x8xf32> -> vector<2x8x8xf32>
    "tpu.trace_stop"() : () -> ()
    %76 = vector.shape_cast %75 : vector<2x8x8xf32> to vector<16x8xf32>
    %77 = vector.extract_strided_slice %4 {offsets = [16, 0], sizes = [8, 32], strides = [1, 1]} : vector<32x32xf32> to vector<8x32xf32>
    %cst_24 = arith.constant dense<0.000000e+00> : vector<16x32xf32>
    %78 = tpu.matmul %76, %77, %cst_24 {dimension_numbers = #tpu.dot_dimension_numbers<[1], [0], [0], [1], [0, 0, 1, 1], [], []>} : vector<16x8xf32>, vector<8x32xf32>, vector<16x32xf32> -> vector<16x32xf32>
    %79 = arith.addf %55, %78 : vector<16x32xf32>
    %80 = vector.extract_strided_slice %6 {offsets = [0, 24], sizes = [16, 8], strides = [1, 1]} : vector<16x96xf32> to vector<16x8xf32>
    %81 = vector.shape_cast %80 : vector<16x8xf32> to vector<2x8x8xf32>
    %82 = vector.extract_strided_slice %6 {offsets = [0, 56], sizes = [16, 8], strides = [1, 1]} : vector<16x96xf32> to vector<16x8xf32>
    %83 = vector.shape_cast %82 : vector<16x8xf32> to vector<2x8x8xf32>
    %84 = vector.extract_strided_slice %6 {offsets = [0, 88], sizes = [16, 8], strides = [1, 1]} : vector<16x96xf32> to vector<16x8xf32>
    %85 = vector.shape_cast %84 : vector<16x8xf32> to vector<2x8x8xf32>
    "tpu.trace_start"() <{level = 10 : i32, message = "bqd,bkd->bqk"}> : () -> ()
    %cst_25 = arith.constant dense<0.000000e+00> : vector<2x8x8xf32>
    %86 = tpu.matmul %81, %83, %cst_25 {dimension_numbers = #tpu.dot_dimension_numbers<[2], [2], [1], [1], [0, 0, 0, 1, 1, 1], [0], [0]>} : vector<2x8x8xf32>, vector<2x8x8xf32>, vector<2x8x8xf32> -> vector<2x8x8xf32>
    "tpu.trace_stop"() : () -> ()
    %87 = vector.broadcast %1 : f32 to vector<2x8x8xf32>
    %88 = arith.mulf %86, %87 : vector<2x8x8xf32>
    %cst_26 = arith.constant dense<0xFF800000> : vector<2x8xf32>
    %89 = vector.multi_reduction <maximumf>, %88, %cst_26 [2] : vector<2x8x8xf32> to vector<2x8xf32>
    %90 = vector.shape_cast %89 : vector<2x8xf32> to vector<2x8x1xf32>
    %91 = vector.broadcast %90 : vector<2x8x1xf32> to vector<2x8x8xf32>
    %92 = arith.subf %88, %91 : vector<2x8x8xf32>
    %93 = math.exp %92 : vector<2x8x8xf32>
    %cst_27 = arith.constant dense<0.000000e+00> : vector<2x8xf32>
    %94 = vector.multi_reduction <add>, %93, %cst_27 [2] : vector<2x8x8xf32> to vector<2x8xf32>
    %95 = vector.shape_cast %94 : vector<2x8xf32> to vector<2x8x1xf32>
    %96 = tpu.reciprocal %95 {approx = true} : vector<2x8x1xf32> -> vector<2x8x1xf32>
    %97 = vector.broadcast %96 : vector<2x8x1xf32> to vector<2x8x8xf32>
    %98 = arith.mulf %93, %97 : vector<2x8x8xf32>
    "tpu.trace_start"() <{level = 10 : i32, message = "bqk,bkd->bqd"}> : () -> ()
    %cst_28 = arith.constant dense<0.000000e+00> : vector<2x8x8xf32>
    %99 = tpu.matmul %98, %85, %cst_28 {dimension_numbers = #tpu.dot_dimension_numbers<[2], [1], [1], [2], [0, 0, 0, 1, 1, 2], [0], [0]>} : vector<2x8x8xf32>, vector<2x8x8xf32>, vector<2x8x8xf32> -> vector<2x8x8xf32>
    "tpu.trace_stop"() : () -> ()
    %100 = vector.shape_cast %99 : vector<2x8x8xf32> to vector<16x8xf32>
    %101 = vector.extract_strided_slice %4 {offsets = [24, 0], sizes = [8, 32], strides = [1, 1]} : vector<32x32xf32> to vector<8x32xf32>
    %cst_29 = arith.constant dense<0.000000e+00> : vector<16x32xf32>
    %102 = tpu.matmul %100, %101, %cst_29 {dimension_numbers = #tpu.dot_dimension_numbers<[1], [0], [0], [1], [0, 0, 1, 1], [], []>} : vector<16x8xf32>, vector<8x32xf32>, vector<16x32xf32> -> vector<16x32xf32>
    %103 = arith.addf %79, %102 : vector<16x32xf32>
    %104 = arith.addf %2, %103 : vector<16x32xf32>
    %105 = vector.extract_strided_slice %3 {offsets = [0, 0], sizes = [1, 32], strides = [1, 1]} : vector<10x64xf32> to vector<1x32xf32>
    %106 = vector.extract_strided_slice %3 {offsets = [1, 0], sizes = [1, 32], strides = [1, 1]} : vector<10x64xf32> to vector<1x32xf32>
    %cst_30 = arith.constant dense<0.000000e+00> : vector<16xf32>
    %107 = vector.multi_reduction <add>, %104, %cst_30 [1] : vector<16x32xf32> to vector<16xf32>
    %108 = vector.shape_cast %107 : vector<16xf32> to vector<16x1xf32>
    %cst_31 = arith.constant 3.200000e+01 : f32
    %109 = vector.broadcast %cst_31 : f32 to vector<16x1xf32>
    %110 = arith.divf %108, %109 : vector<16x1xf32>
    %111 = vector.broadcast %110 : vector<16x1xf32> to vector<16x32xf32>
    %112 = arith.subf %104, %111 : vector<16x32xf32>
    %113 = arith.mulf %112, %112 : vector<16x32xf32>
    %cst_32 = arith.constant dense<0.000000e+00> : vector<16xf32>
    %114 = vector.multi_reduction <add>, %113, %cst_32 [1] : vector<16x32xf32> to vector<16xf32>
    %115 = vector.shape_cast %114 : vector<16xf32> to vector<16x1xf32>
    %cst_33 = arith.constant 3.200000e+01 : f32
    %116 = vector.broadcast %cst_33 : f32 to vector<16x1xf32>
    %117 = arith.divf %115, %116 : vector<16x1xf32>
    %118 = vector.broadcast %110 : vector<16x1xf32> to vector<16x32xf32>
    %119 = arith.subf %104, %118 : vector<16x32xf32>
    %cst_34 = arith.constant 9.99999974E-6 : f32
    %120 = vector.broadcast %cst_34 : f32 to vector<16x1xf32>
    %121 = arith.addf %117, %120 : vector<16x1xf32>
    %122 = math.rsqrt %121 : vector<16x1xf32>
    %123 = vector.broadcast %122 : vector<16x1xf32> to vector<16x32xf32>
    %124 = arith.mulf %119, %123 : vector<16x32xf32>
    %125 = vector.broadcast %105 : vector<1x32xf32> to vector<16x32xf32>
    %126 = arith.mulf %124, %125 : vector<16x32xf32>
    %127 = vector.broadcast %106 : vector<1x32xf32> to vector<16x32xf32>
    %128 = arith.addf %126, %127 : vector<16x32xf32>
    %c0_35 = arith.constant 0 : index
    %c0_36 = arith.constant 0 : index
    %129 = vector.load %arg3[%c0_35, %c0_36] : memref<32x64xf32, #tpu.memory_space<vmem>>, vector<32x64xf32>
    %cst_37 = arith.constant dense<0.000000e+00> : vector<16x64xf32>
    %130 = tpu.matmul %128, %129, %cst_37 {dimension_numbers = #tpu.dot_dimension_numbers<[1], [0], [0], [1], [0, 0, 1, 1], [], []>} : vector<16x32xf32>, vector<32x64xf32>, vector<16x64xf32> -> vector<16x64xf32>
    %131 = vector.extract_strided_slice %3 {offsets = [2, 0], sizes = [1, 64], strides = [1, 1]} : vector<10x64xf32> to vector<1x64xf32>
    %132 = vector.broadcast %131 : vector<1x64xf32> to vector<16x64xf32>
    %133 = arith.addf %130, %132 : vector<16x64xf32>
    %cst_38 = arith.constant 0.000000e+00 : f32
    %134 = vector.broadcast %cst_38 : f32 to vector<16x64xf32>
    %135 = arith.maximumf %133, %134 : vector<16x64xf32>
    %c0_39 = arith.constant 0 : index
    %c0_40 = arith.constant 0 : index
    %136 = vector.load %arg4[%c0_39, %c0_40] : memref<64x32xf32, #tpu.memory_space<vmem>>, vector<64x32xf32>
    %cst_41 = arith.constant dense<0.000000e+00> : vector<16x32xf32>
    %137 = tpu.matmul %135, %136, %cst_41 {dimension_numbers = #tpu.dot_dimension_numbers<[1], [0], [0], [1], [0, 0, 1, 1], [], []>} : vector<16x64xf32>, vector<64x32xf32>, vector<16x32xf32> -> vector<16x32xf32>
    %138 = vector.extract_strided_slice %3 {offsets = [3, 0], sizes = [1, 32], strides = [1, 1]} : vector<10x64xf32> to vector<1x32xf32>
    %139 = vector.broadcast %138 : vector<1x32xf32> to vector<16x32xf32>
    %140 = arith.addf %137, %139 : vector<16x32xf32>
    %141 = arith.addf %128, %140 : vector<16x32xf32>
    %142 = vector.extract_strided_slice %3 {offsets = [4, 0], sizes = [1, 32], strides = [1, 1]} : vector<10x64xf32> to vector<1x32xf32>
    %143 = vector.extract_strided_slice %3 {offsets = [5, 0], sizes = [1, 32], strides = [1, 1]} : vector<10x64xf32> to vector<1x32xf32>
    %cst_42 = arith.constant dense<0.000000e+00> : vector<16xf32>
    %144 = vector.multi_reduction <add>, %141, %cst_42 [1] : vector<16x32xf32> to vector<16xf32>
    %145 = vector.shape_cast %144 : vector<16xf32> to vector<16x1xf32>
    %cst_43 = arith.constant 3.200000e+01 : f32
    %146 = vector.broadcast %cst_43 : f32 to vector<16x1xf32>
    %147 = arith.divf %145, %146 : vector<16x1xf32>
    %148 = vector.broadcast %147 : vector<16x1xf32> to vector<16x32xf32>
    %149 = arith.subf %141, %148 : vector<16x32xf32>
    %150 = arith.mulf %149, %149 : vector<16x32xf32>
    %cst_44 = arith.constant dense<0.000000e+00> : vector<16xf32>
    %151 = vector.multi_reduction <add>, %150, %cst_44 [1] : vector<16x32xf32> to vector<16xf32>
    %152 = vector.shape_cast %151 : vector<16xf32> to vector<16x1xf32>
    %cst_45 = arith.constant 3.200000e+01 : f32
    %153 = vector.broadcast %cst_45 : f32 to vector<16x1xf32>
    %154 = arith.divf %152, %153 : vector<16x1xf32>
    %155 = vector.broadcast %147 : vector<16x1xf32> to vector<16x32xf32>
    %156 = arith.subf %141, %155 : vector<16x32xf32>
    %cst_46 = arith.constant 9.99999974E-6 : f32
    %157 = vector.broadcast %cst_46 : f32 to vector<16x1xf32>
    %158 = arith.addf %154, %157 : vector<16x1xf32>
    %159 = math.rsqrt %158 : vector<16x1xf32>
    %160 = vector.broadcast %159 : vector<16x1xf32> to vector<16x32xf32>
    %161 = arith.mulf %156, %160 : vector<16x32xf32>
    %162 = vector.broadcast %142 : vector<1x32xf32> to vector<16x32xf32>
    %163 = arith.mulf %161, %162 : vector<16x32xf32>
    %164 = vector.broadcast %143 : vector<1x32xf32> to vector<16x32xf32>
    %165 = arith.addf %163, %164 : vector<16x32xf32>
    %166 = vector.shape_cast %165 : vector<16x32xf32> to vector<2x8x32xf32>
    %cst_47 = arith.constant dense<0.000000e+00> : vector<2x32xf32>
    %167 = vector.multi_reduction <add>, %166, %cst_47 [1] : vector<2x8x32xf32> to vector<2x32xf32>
    %cst_48 = arith.constant 8.000000e+00 : f32
    %168 = vector.broadcast %cst_48 : f32 to vector<2x32xf32>
    %169 = arith.divf %167, %168 : vector<2x32xf32>
    %c0_49 = arith.constant 0 : index
    %c0_50 = arith.constant 0 : index
    %170 = vector.load %arg5[%c0_49, %c0_50] : memref<32x16xf32, #tpu.memory_space<vmem>>, vector<32x16xf32>
    %cst_51 = arith.constant dense<0.000000e+00> : vector<2x16xf32>
    %171 = tpu.matmul %169, %170, %cst_51 {dimension_numbers = #tpu.dot_dimension_numbers<[1], [0], [0], [1], [0, 0, 1, 1], [], []>} : vector<2x32xf32>, vector<32x16xf32>, vector<2x16xf32> -> vector<2x16xf32>
    %172 = vector.extract_strided_slice %3 {offsets = [6, 0], sizes = [1, 16], strides = [1, 1]} : vector<10x64xf32> to vector<1x16xf32>
    %173 = vector.broadcast %172 : vector<1x16xf32> to vector<2x16xf32>
    %174 = arith.addf %171, %173 : vector<2x16xf32>
    %c0_52 = arith.constant 0 : index
    %c0_53 = arith.constant 0 : index
    %175 = vector.load %arg6[%c0_52, %c0_53] : memref<16x32xf32, #tpu.memory_space<vmem>>, vector<16x32xf32>
    %cst_54 = arith.constant dense<0.000000e+00> : vector<2x32xf32>
    %176 = tpu.matmul %174, %175, %cst_54 {dimension_numbers = #tpu.dot_dimension_numbers<[1], [0], [0], [1], [0, 0, 1, 1], [], []>} : vector<2x16xf32>, vector<16x32xf32>, vector<2x32xf32> -> vector<2x32xf32>
    %177 = vector.extract_strided_slice %3 {offsets = [7, 0], sizes = [1, 32], strides = [1, 1]} : vector<10x64xf32> to vector<1x32xf32>
    %178 = vector.broadcast %177 : vector<1x32xf32> to vector<2x32xf32>
    %179 = arith.addf %176, %178 : vector<2x32xf32>
    %cst_55 = arith.constant 0.000000e+00 : f32
    %180 = vector.broadcast %cst_55 : f32 to vector<2x32xf32>
    %181 = arith.maximumf %179, %180 : vector<2x32xf32>
    %182 = vector.extract_strided_slice %3 {offsets = [8, 0], sizes = [1, 32], strides = [1, 1]} : vector<10x64xf32> to vector<1x32xf32>
    %183 = vector.broadcast %182 : vector<1x32xf32> to vector<2x32xf32>
    %184 = arith.mulf %181, %183 : vector<2x32xf32>
    %cst_56 = arith.constant dense<0.000000e+00> : vector<2xf32>
    %185 = vector.multi_reduction <add>, %184, %cst_56 [1] : vector<2x32xf32> to vector<2xf32>
    %186 = vector.shape_cast %185 : vector<2xf32> to vector<2x1xf32>
    %187 = vector.extract_strided_slice %3 {offsets = [9, 0], sizes = [1, 1], strides = [1, 1]} : vector<10x64xf32> to vector<1x1xf32>
    %188 = vector.broadcast %187 : vector<1x1xf32> to vector<2x1xf32>
    %189 = arith.addf %186, %188 : vector<2x1xf32>
    %c0_57 = arith.constant 0 : index
    %c0_58 = arith.constant 0 : index
    %190 = vector.load %arg8[%c0_57, %c0_58] : memref<2x1xf32, #tpu.memory_space<vmem>>, vector<2x1xf32>
    tpu.vector_store %arg8[%c0_57, %c0_58], %189 {strides = array<i32>} : memref<2x1xf32, #tpu.memory_space<vmem>>, vector<2x1xf32>,
    return
  }
}

</mosaic_0001>

<llo_original>
// kernel: tpu_custom_call.1
$region0: #{tpu_custom_call.1}
  #allocation0 [shape = 'u32[]', space=smem, size = 0x4, offset = 0x4, fixed_abs, tag = 'smem constant byte address 0x4 - core index']
  #allocation1 [shape = 'u32[72,128]{1,0:T(1,128)}', space=vmem, size = 0x9000, scoped, tag = 'internal scratch']
  %s0 = inlined_call_operand.vmem [shape: f32[16,32], index: 0, kind: input, shape index: {}]
  %s1 = inlined_call_operand.vmem [shape: f32[32,96], index: 1, kind: input, shape index: {}]
  %s2 = inlined_call_operand.vmem [shape: f32[32,32], index: 2, kind: input, shape index: {}]
  %s3 = inlined_call_operand.vmem [shape: f32[32,64], index: 3, kind: input, shape index: {}]
  %s4 = inlined_call_operand.vmem [shape: f32[64,32], index: 4, kind: input, shape index: {}]
  %s5 = inlined_call_operand.vmem [shape: f32[32,16], index: 5, kind: input, shape index: {}]
  %s6 = inlined_call_operand.hbm [shape: f32[16,32], index: 6, kind: input, shape index: {}]
  %s7 = inlined_call_operand.hbm [shape: f32[10,64], index: 7, kind: input, shape index: {}]
  %s8 = inlined_call_operand.vmem [shape: f32[2,1], index: 8, kind: output, shape index: {}]
  %s9 = sld [smem:[#allocation0]]
  $region50: #{tpu_custom_call.1} parent=0
    _
  %s11 = ssub.s32 1, %s9
  %s12 = scalar_select 0, %s11, %s9
  $region1: #{tpu_custom_call.1} parent=0
    #allocation2 [shape = 'u8[8192]{0}', space=vmem, size = 0x2000, scoped, tag = 'input window, operand 6, single buffered']
    #allocation3 [shape = 's32[1]{0}', space=sflag, size = 0x4, scoped, tag = 'scoped memory for tpu_custom_call.1']
    #allocation4 [shape = 'u8[8192]{0}', space=vmem, size = 0x2000, scoped, tag = 'input window, operand 7, single buffered']
    #allocation5 [shape = 's32[1]{0}', space=sflag, size = 0x4, scoped, tag = 'scoped memory for tpu_custom_call.1']
    %13 = vsyncpa [#allocation3], 0
    %14 = vsyncpa [#allocation5], 0
    // Predicated region
    $region2: #{tpu_custom_call.1} parent=1 // pred_check
      _
    $region3: #{tpu_custom_call.1} parent=1 // pred_check_branch
      %16 = sbr.rel (0) target = $region5
    $region4: #{tpu_custom_call.1} parent=1 // pred_region
      _
    $region5: #{tpu_custom_call.1} parent=1 // pred_fallthru
      _
    // Predicated region
    $region6: #{tpu_custom_call.1} parent=1 // pred_check
      _
    $region7: #{tpu_custom_call.1} parent=1 // pred_check_branch
      %18 = sbr.rel (0) target = $region9
    $region8: #{tpu_custom_call.1} parent=1 // pred_region
      _
    $region9: #{tpu_custom_call.1} parent=1 // pred_fallthru
      _
    // Predicated region
    $region10: #{tpu_custom_call.1} parent=1 // pred_check
      _
    $region11: #{tpu_custom_call.1} parent=1 // pred_check_branch
      %20 = sbr.rel (0) target = $region13
    $region12: #{tpu_custom_call.1} parent=1 // pred_region
      _
    $region13: #{tpu_custom_call.1} parent=1 // pred_fallthru
      _
    // Predicated region
    $region14: #{tpu_custom_call.1} parent=1 // pred_check
      _
    $region15: #{tpu_custom_call.1} parent=1 // pred_check_branch
      %22 = sbr.rel (0) target = $region17
    $region16: #{tpu_custom_call.1} parent=1 // pred_region
      _
    $region17: #{tpu_custom_call.1} parent=1 // pred_fallthru
      _
    // Predicated region
    $region18: #{tpu_custom_call.1} parent=1 // pred_check
      _
    $region19: #{tpu_custom_call.1} parent=1 // pred_check_branch
      %24 = sbr.rel (0) target = $region21
    $region20: #{tpu_custom_call.1} parent=1 // pred_region
      _
    $region21: #{tpu_custom_call.1} parent=1 // pred_fallthru
      _
    // Predicated region
    $region22: #{tpu_custom_call.1} parent=1 // pred_check
      _
    $region23: #{tpu_custom_call.1} parent=1 // pred_check_branch
      %26 = sbr.rel (0) target = $region25
    $region24: #{tpu_custom_call.1} parent=1 // pred_region
      _
    $region25: #{tpu_custom_call.1} parent=1 // pred_fallthru
      _
    // Predicated region
    $region26: #{tpu_custom_call.1} parent=1 // pred_check
      _
    $region27: #{tpu_custom_call.1} parent=1 // pred_check_branch
      %28 = sbr.rel (0) target = $region29
    $region28: #{tpu_custom_call.1} parent=1 // pred_region
      %30 = vsyncadd [#allocation3], 0
      %s31 = sshll.u32 %s6, 4
      %s32 = int_to_ptr.hbm [resolvable:$true] %s31
      %s33 = sshll.u32 [#allocation2], 4
      %s34 = int_to_ptr.vmem [resolvable:$true] %s33
      %39 = dma.hbm_to_vmem [thread:$0]  %s32, 256, %s34, [#allocation3], 128, 128, 8
    $region29: #{tpu_custom_call.1} parent=1 // pred_fallthru
      _
    // Predicated region
    $region30: #{tpu_custom_call.1} parent=1 // pred_check
      _
    $region31: #{tpu_custom_call.1} parent=1 // pred_check_branch
      %41 = sbr.rel (0) target = $region33
    $region32: #{tpu_custom_call.1} parent=1 // pred_region
      %43 = vsyncadd [#allocation5], 0
      %s44 = sshll.u32 %s7, 4
      %s45 = int_to_ptr.hbm [resolvable:$true] %s44
      %s46 = sshll.u32 [#allocation4], 4
      %s47 = int_to_ptr.vmem [resolvable:$true] %s46
      %52 = dma.hbm_to_vmem [thread:$0]  %s45, 256, %s47, [#allocation5], 128, 128, 8
    $region33: #{tpu_custom_call.1} parent=1 // pred_fallthru
      _
    // Predicated region
    $region34: #{tpu_custom_call.1} parent=1 // pred_check
      _
    $region35: #{tpu_custom_call.1} parent=1 // pred_check_branch
      %54 = sbr.rel (0) target = $region37
    $region36: #{tpu_custom_call.1} parent=1 // pred_region
      %56 = dma.done [#allocation3], 256
    $region37: #{tpu_custom_call.1} parent=1 // pred_fallthru
      _
    // Predicated region
    $region38: #{tpu_custom_call.1} parent=1 // pred_check
      _
    $region39: #{tpu_custom_call.1} parent=1 // pred_check_branch
      %58 = sbr.rel (0) target = $region41
    $region40: #{tpu_custom_call.1} parent=1 // pred_region
      %60 = dma.done [#allocation5], 256
    $region41: #{tpu_custom_call.1} parent=1 // pred_fallthru
      _
    %v61 = vld [vmem:[%s0] sm:$0xff]
    %v62 = vld [vmem:[%s0 + $0x8] sm:$0xff]
    %v63 = vld [vmem:[#allocation4] sm:$0xff]
    %v64 = vld [vmem:[#allocation4 + $0x8] sm:$0x3]
    %v65 = vld [vmem:[%s2] sm:$0xff]
    %v66 = vld [vmem:[%s2 + $0x8] sm:$0xff]
    %v67 = vld [vmem:[%s2 + $0x10] sm:$0xff]
    %v68 = vld [vmem:[%s2 + $0x18] sm:$0xff]
    %v69 = vld [vmem:[%s1] sm:$0xff]
    %v70 = vld [vmem:[%s1 + $0x8] sm:$0xff]
    %v71 = vld [vmem:[%s1 + $0x10] sm:$0xff]
    %v72 = vld [vmem:[%s1 + $0x18] sm:$0xff]
    %vm73 = vcmask 261120
    %v75 = vsel %vm73, %v61, 0
    %v78 = vsel %vm73, %v62, 0
    %80 = vmatpush.msra.mxu0 0.0
    %81 = vmatpush.msra.mxu0 0.0
    %82 = vmatpush.msra.mxu0 0.0
    %83 = vmatpush.msra.mxu0 0.0
    %84 = vmatpush.msra.mxu0 0.0
    %85 = vmatpush.msra.mxu0 0.0
    %86 = vmatpush.msra.mxu0 0.0
    %87 = vmatpush.msra.mxu0 0.0
    %88 = vmatpush.msra.mxu0 0.0
    %89 = vmatpush.msra.mxu0 0.0
    %90 = vmatpush.msra.mxu0 0.0
    %91 = vmatpush.msra.mxu0 0.0
    %92 = vmatpush.msra.mxu0 %v72
    %93 = vmatpush.msra.mxu0 %v71
    %94 = vmatpush.msra.mxu0 %v70
    %95 = vmatpush.msra.mxu0 %v69
    %96 = vmatmul.f32.gmra.mxu0 %v75
    %v97 = vpop.f32.mrf.mxu0
    %v98 = vadd.f32 0.0, %v97
    %99 = vmatmul.f32.gmra.mxu0 %v78
    %v100 = vpop.f32.mrf.mxu0
    %v101 = vadd.f32 0.0, %v100
    %102 = vdwg.mxu0
    %104 = vrot.lane.b32.xlu0 %v98, 96
    %v105 = vpop.permute.xlu0 %104
    %vm106 = vcmask 64512
    %v107 = vsel %vm106, %v98, 0
    %v109 = vsel %vm106, %v105, 0
    %111 = vmatpush.xpose.msra.mxu0 0.0
    %112 = vmatpush.xpose.msra.mxu0 0.0
    %113 = vmatpush.xpose.msra.mxu0 0.0
    %114 = vmatpush.xpose.msra.mxu0 0.0
    %115 = vmatpush.xpose.msra.mxu0 0.0
    %116 = vmatpush.xpose.msra.mxu0 0.0
    %117 = vmatpush.xpose.msra.mxu0 0.0
    %118 = vmatpush.xpose.msra.mxu0 0.0
    %119 = vmatpush.xpose.msra.mxu0 0.0
    %120 = vmatpush.xpose.msra.mxu0 0.0
    %121 = vmatpush.xpose.msra.mxu0 0.0
    %122 = vmatpush.xpose.msra.mxu0 0.0
    %123 = vmatpush.xpose.msra.mxu0 0.0
    %124 = vmatpush.xpose.msra.mxu0 0.0
    %125 = vmatpush.xpose.msra.mxu0 0.0
    %126 = vmatpush.xpose.msra.mxu0 %v109
    %127 = vmatmul.f32.gmra.mxu0 %v107
    %v128 = vpop.f32.mrf.mxu0
    %v129 = vadd.f32 0.0, %v128
    %130 = vdwg.mxu0
    %132 = vrot.lane.b32.xlu0 %v101, 96
    %v133 = vpop.permute.xlu0 %132
    %v134 = vsel %vm106, %v101, 0
    %v136 = vsel %vm106, %v133, 0
    %138 = vmatpush.xpose.msra.mxu0 0.0
    %139 = vmatpush.xpose.msra.mxu0 0.0
    %140 = vmatpush.xpose.msra.mxu0 0.0
    %141 = vmatpush.xpose.msra.mxu0 0.0
    %142 = vmatpush.xpose.msra.mxu0 0.0
    %143 = vmatpush.xpose.msra.mxu0 0.0
    %144 = vmatpush.xpose.msra.mxu0 0.0
    %145 = vmatpush.xpose.msra.mxu0 0.0
    %146 = vmatpush.xpose.msra.mxu0 0.0
    %147 = vmatpush.xpose.msra.mxu0 0.0
    %148 = vmatpush.xpose.msra.mxu0 0.0
    %149 = vmatpush.xpose.msra.mxu0 0.0
    %150 = vmatpush.xpose.msra.mxu0 0.0
    %151 = vmatpush.xpose.msra.mxu0 0.0
    %152 = vmatpush.xpose.msra.mxu0 0.0
    %153 = vmatpush.xpose.msra.mxu0 %v136
    %154 = vmatmul.f32.gmra.mxu0 %v134
    %v155 = vpop.f32.mrf.mxu0
    %v156 = vadd.f32 0.0, %v155
    %157 = vdwg.mxu0
    %v158 = vmul.f32 %v129, 0.35355338
    %v159 = vmul.f32 %v156, 0.35355338
    %v160 = vsel %vm106, %v158, -inf
    %161 = vmax.xlane.f32.xlu0 %v160
    %v162 = vpop.xlane.xlu0 %161
    %v163 = vsel %vm106, %v159, -inf
    %164 = vmax.xlane.f32.xlu0 %v163
    %v165 = vpop.xlane.xlu0 %164
    %v166 = vsub.f32 %v158, %v162
    %v167 = vsub.f32 %v159, %v165
    %v168 = vmul.f32 %v166, 1.442695
    %v169 = vpow.pop %v168
    %v170 = vmul.f32 %v167, 1.442695
    %v171 = vpow.pop %v170
    %v172 = vsel %vm106, %v169, 0.0
    %173 = vadd.xlane.f32.xlu0 %v172
    %v174 = vpop.xlane.xlu0 %173
    %v175 = vsel %vm106, %v171, 0.0
    %176 = vadd.xlane.f32.xlu0 %v175
    %v177 = vpop.xlane.xlu0 %176
    %v178 = vrcp.pop %v174
    %v179 = vrcp.pop %v177
    %v180 = vmul.f32 %v169, %v178
    %v181 = vmul.f32 %v171, %v179
    %182 = vrot.lane.b32.xlu0 %v98, 64
    %v183 = vpop.permute.xlu0 %182
    %v186 = vsel %vm106, %v180, 0
    %188 = vmatpush.msra.mxu0 0.0
    %189 = vmatpush.msra.mxu0 0.0
    %190 = vmatpush.msra.mxu0 0.0
    %191 = vmatpush.msra.mxu0 0.0
    %192 = vmatpush.msra.mxu0 0.0
    %193 = vmatpush.msra.mxu0 0.0
    %194 = vmatpush.msra.mxu0 0.0
    %195 = vmatpush.msra.mxu0 0.0
    %196 = vmatpush.msra.mxu0 0.0
    %197 = vmatpush.msra.mxu0 0.0
    %198 = vmatpush.msra.mxu0 0.0
    %199 = vmatpush.msra.mxu0 0.0
    %200 = vmatpush.msra.mxu0 0.0
    %201 = vmatpush.msra.mxu0 0.0
    %202 = vmatpush.msra.mxu0 0.0
    %203 = vmatpush.msra.mxu0 %v183
    %204 = vmatmul.f32.gmra.mxu0 %v186
    %v205 = vpop.f32.mrf.mxu0
    %v206 = vadd.f32 0.0, %v205
    %207 = vdwg.mxu0
    %208 = vrot.lane.b32.xlu0 %v101, 64
    %v209 = vpop.permute.xlu0 %208
    %v212 = vsel %vm106, %v181, 0
    %214 = vmatpush.msra.mxu0 0.0
    %215 = vmatpush.msra.mxu0 0.0
    %216 = vmatpush.msra.mxu0 0.0
    %217 = vmatpush.msra.mxu0 0.0
    %218 = vmatpush.msra.mxu0 0.0
    %219 = vmatpush.msra.mxu0 0.0
    %220 = vmatpush.msra.mxu0 0.0
    %221 = vmatpush.msra.mxu0 0.0
    %222 = vmatpush.msra.mxu0 0.0
    %223 = vmatpush.msra.mxu0 0.0
    %224 = vmatpush.msra.mxu0 0.0
    %225 = vmatpush.msra.mxu0 0.0
    %226 = vmatpush.msra.mxu0 0.0
    %227 = vmatpush.msra.mxu0 0.0
    %228 = vmatpush.msra.mxu0 0.0
    %229 = vmatpush.msra.mxu0 %v209
    %230 = vmatmul.f32.gmra.mxu0 %v212
    %v231 = vpop.f32.mrf.mxu0
    %v232 = vadd.f32 0.0, %v231
    %233 = vdwg.mxu0
    %234 = vrot.lane.b32.xlu0 %v98, 120
    %v235 = vpop.permute.xlu0 %234
    %236 = vrot.lane.b32.xlu0 %v98, 88
    %v237 = vpop.permute.xlu0 %236
    %v238 = vsel %vm106, %v235, 0
    %v240 = vsel %vm106, %v237, 0
    %242 = vmatpush.xpose.msra.mxu0 0.0
    %243 = vmatpush.xpose.msra.mxu0 0.0
    %244 = vmatpush.xpose.msra.mxu0 0.0
    %245 = vmatpush.xpose.msra.mxu0 0.0
    %246 = vmatpush.xpose.msra.mxu0 0.0
    %247 = vmatpush.xpose.msra.mxu0 0.0
    %248 = vmatpush.xpose.msra.mxu0 0.0
    %249 = vmatpush.xpose.msra.mxu0 0.0
    %250 = vmatpush.xpose.msra.mxu0 0.0
    %251 = vmatpush.xpose.msra.mxu0 0.0
    %252 = vmatpush.xpose.msra.mxu0 0.0
    %253 = vmatpush.xpose.msra.mxu0 0.0
    %254 = vmatpush.xpose.msra.mxu0 0.0
    %255 = vmatpush.xpose.msra.mxu0 0.0
    %256 = vmatpush.xpose.msra.mxu0 0.0
    %257 = vmatpush.xpose.msra.mxu0 %v240
    %258 = vmatmul.f32.gmra.mxu0 %v238
    %v259 = vpop.f32.mrf.mxu0
    %v260 = vadd.f32 0.0, %v259
    %261 = vdwg.mxu0
    %262 = vrot.lane.b32.xlu0 %v101, 120
    %v263 = vpop.permute.xlu0 %262
    %264 = vrot.lane.b32.xlu0 %v101, 88
    %v265 = vpop.permute.xlu0 %264
    %v266 = vsel %vm106, %v263, 0
    %v268 = vsel %vm106, %v265, 0
    %270 = vmatpush.xpose.msra.mxu0 0.0
    %271 = vmatpush.xpose.msra.mxu0 0.0
    %272 = vmatpush.xpose.msra.mxu0 0.0
    %273 = vmatpush.xpose.msra.mxu0 0.0
    %274 = vmatpush.xpose.msra.mxu0 0.0
    %275 = vmatpush.xpose.msra.mxu0 0.0
    %276 = vmatpush.xpose.msra.mxu0 0.0
    %277 = vmatpush.xpose.msra.mxu0 0.0
    %278 = vmatpush.xpose.msra.mxu0 0.0
    %279 = vmatpush.xpose.msra.mxu0 0.0
    %280 = vmatpush.xpose.msra.mxu0 0.0
    %281 = vmatpush.xpose.msra.mxu0 0.0
    %282 = vmatpush.xpose.msra.mxu0 0.0
    %283 = vmatpush.xpose.msra.mxu0 0.0
    %284 = vmatpush.xpose.msra.mxu0 0.0
    %285 = vmatpush.xpose.msra.mxu0 %v268
    %286 = vmatmul.f32.gmra.mxu0 %v266
    %v287 = vpop.f32.mrf.mxu0
    %v288 = vadd.f32 0.0, %v287
    %289 = vdwg.mxu0
    %v290 = vmul.f32 %v260, 0.35355338
    %v291 = vmul.f32 %v288, 0.35355338
    %v292 = vsel %vm106, %v290, -inf
    %293 = vmax.xlane.f32.xlu0 %v292
    %v294 = vpop.xlane.xlu0 %293
    %v295 = vsel %vm106, %v291, -inf
    %296 = vmax.xlane.f32.xlu0 %v295
    %v297 = vpop.xlane.xlu0 %296
    %v298 = vsub.f32 %v290, %v294
    %v299 = vsub.f32 %v291, %v297
    %v300 = vmul.f32 %v298, 1.442695
    %v301 = vpow.pop %v300
    %v302 = vmul.f32 %v299, 1.442695
    %v303 = vpow.pop %v302
    %v304 = vsel %vm106, %v301, 0.0
    %305 = vadd.xlane.f32.xlu0 %v304
    %v306 = vpop.xlane.xlu0 %305
    %v307 = vsel %vm106, %v303, 0.0
    %308 = vadd.xlane.f32.xlu0 %v307
    %v309 = vpop.xlane.xlu0 %308
    %v310 = vrcp.pop %v306
    %v311 = vrcp.pop %v309
    %v312 = vmul.f32 %v301, %v310
    %v313 = vmul.f32 %v303, %v311
    %314 = vrot.lane.b32.xlu0 %v98, 56
    %v315 = vpop.permute.xlu0 %314
    %v318 = vsel %vm106, %v312, 0
    %320 = vmatpush.msra.mxu0 0.0
    %321 = vmatpush.msra.mxu0 0.0
    %322 = vmatpush.msra.mxu0 0.0
    %323 = vmatpush.msra.mxu0 0.0
    %324 = vmatpush.msra.mxu0 0.0
    %325 = vmatpush.msra.mxu0 0.0
    %326 = vmatpush.msra.mxu0 0.0
    %327 = vmatpush.msra.mxu0 0.0
    %328 = vmatpush.msra.mxu0 0.0
    %329 = vmatpush.msra.mxu0 0.0
    %330 = vmatpush.msra.mxu0 0.0
    %331 = vmatpush.msra.mxu0 0.0
    %332 = vmatpush.msra.mxu0 0.0
    %333 = vmatpush.msra.mxu0 0.0
    %334 = vmatpush.msra.mxu0 0.0
    %335 = vmatpush.msra.mxu0 %v315
    %336 = vmatmul.f32.gmra.mxu0 %v318
    %v337 = vpop.f32.mrf.mxu0
    %v338 = vadd.f32 0.0, %v337
    %339 = vdwg.mxu0
    %340 = vrot.lane.b32.xlu0 %v101, 56
    %v341 = vpop.permute.xlu0 %340
    %v344 = vsel %vm106, %v313, 0
    %346 = vmatpush.msra.mxu0 0.0
    %347 = vmatpush.msra.mxu0 0.0
    %348 = vmatpush.msra.mxu0 0.0
    %349 = vmatpush.msra.mxu0 0.0
    %350 = vmatpush.msra.mxu0 0.0
    %351 = vmatpush.msra.mxu0 0.0
    %352 = vmatpush.msra.mxu0 0.0
    %353 = vmatpush.msra.mxu0 0.0
    %354 = vmatpush.msra.mxu0 0.0
    %355 = vmatpush.msra.mxu0 0.0
    %356 = vmatpush.msra.mxu0 0.0
    %357 = vmatpush.msra.mxu0 0.0
    %358 = vmatpush.msra.mxu0 0.0
    %359 = vmatpush.msra.mxu0 0.0
    %360 = vmatpush.msra.mxu0 0.0
    %361 = vmatpush.msra.mxu0 %v341
    %362 = vmatmul.f32.gmra.mxu0 %v344
    %v363 = vpop.f32.mrf.mxu0
    %v364 = vadd.f32 0.0, %v363
    %365 = vdwg.mxu0
    %v367 = vsel %vm106, %v338, 0
    %v370 = vsel %vm106, %v364, 0
    %372 = vmatpush.msra.mxu0 0.0
    %373 = vmatpush.msra.mxu0 0.0
    %374 = vmatpush.msra.mxu0 0.0
    %375 = vmatpush.msra.mxu0 0.0
    %376 = vmatpush.msra.mxu0 0.0
    %377 = vmatpush.msra.mxu0 0.0
    %378 = vmatpush.msra.mxu0 0.0
    %379 = vmatpush.msra.mxu0 0.0
    %380 = vmatpush.msra.mxu0 0.0
    %381 = vmatpush.msra.mxu0 0.0
    %382 = vmatpush.msra.mxu0 0.0
    %383 = vmatpush.msra.mxu0 0.0
    %384 = vmatpush.msra.mxu0 0.0
    %385 = vmatpush.msra.mxu0 0.0
    %386 = vmatpush.msra.mxu0 0.0
    %387 = vmatpush.msra.mxu0 %v66
    %388 = vmatmul.f32.gmra.mxu0 %v367
    %v389 = vpop.f32.mrf.mxu0
    %v390 = vadd.f32 0.0, %v389
    %391 = vmatmul.f32.gmra.mxu0 %v370
    %v392 = vpop.f32.mrf.mxu0
    %v393 = vadd.f32 0.0, %v392
    %394 = vdwg.mxu0
    %v396 = vsel %vm106, %v206, 0
    %v399 = vsel %vm106, %v232, 0
    %401 = vmatpush.msra.mxu0 0.0
    %402 = vmatpush.msra.mxu0 0.0
    %403 = vmatpush.msra.mxu0 0.0
    %404 = vmatpush.msra.mxu0 0.0
    %405 = vmatpush.msra.mxu0 0.0
    %406 = vmatpush.msra.mxu0 0.0
    %407 = vmatpush.msra.mxu0 0.0
    %408 = vmatpush.msra.mxu0 0.0
    %409 = vmatpush.msra.mxu0 0.0
    %410 = vmatpush.msra.mxu0 0.0
    %411 = vmatpush.msra.mxu0 0.0
    %412 = vmatpush.msra.mxu0 0.0
    %413 = vmatpush.msra.mxu0 0.0
    %414 = vmatpush.msra.mxu0 0.0
    %415 = vmatpush.msra.mxu0 0.0
    %416 = vmatpush.msra.mxu0 %v65
    %417 = vmatmul.f32.gmra.mxu0 %v396
    %v418 = vpop.f32.mrf.mxu0
    %v419 = vadd.f32 %v390, %v418
    %420 = vmatmul.f32.gmra.mxu0 %v399
    %v421 = vpop.f32.mrf.mxu0
    %v422 = vadd.f32 %v393, %v421
    %423 = vdwg.mxu0
    %424 = vrot.lane.b32.xlu0 %v98, 112
    %v425 = vpop.permute.xlu0 %424
    %426 = vrot.lane.b32.xlu0 %v98, 80
    %v427 = vpop.permute.xlu0 %426
    %v428 = vsel %vm106, %v425, 0
    %v430 = vsel %vm106, %v427, 0
    %432 = vmatpush.xpose.msra.mxu0 0.0
    %433 = vmatpush.xpose.msra.mxu0 0.0
    %434 = vmatpush.xpose.msra.mxu0 0.0
    %435 = vmatpush.xpose.msra.mxu0 0.0
    %436 = vmatpush.xpose.msra.mxu0 0.0
    %437 = vmatpush.xpose.msra.mxu0 0.0
    %438 = vmatpush.xpose.msra.mxu0 0.0
    %439 = vmatpush.xpose.msra.mxu0 0.0
    %440 = vmatpush.xpose.msra.mxu0 0.0
    %441 = vmatpush.xpose.msra.mxu0 0.0
    %442 = vmatpush.xpose.msra.mxu0 0.0
    %443 = vmatpush.xpose.msra.mxu0 0.0
    %444 = vmatpush.xpose.msra.mxu0 0.0
    %445 = vmatpush.xpose.msra.mxu0 0.0
    %446 = vmatpush.xpose.msra.mxu0 0.0
    %447 = vmatpush.xpose.msra.mxu0 %v430
    %448 = vmatmul.f32.gmra.mxu0 %v428
    %v449 = vpop.f32.mrf.mxu0
    %v450 = vadd.f32 0.0, %v449
    %451 = vdwg.mxu0
    %452 = vrot.lane.b32.xlu0 %v101, 112
    %v453 = vpop.permute.xlu0 %452
    %454 = vrot.lane.b32.xlu0 %v101, 80
    %v455 = vpop.permute.xlu0 %454
    %v456 = vsel %vm106, %v453, 0
    %v458 = vsel %vm106, %v455, 0
    %460 = vmatpush.xpose.msra.mxu0 0.0
    %461 = vmatpush.xpose.msra.mxu0 0.0
    %462 = vmatpush.xpose.msra.mxu0 0.0
    %463 = vmatpush.xpose.msra.mxu0 0.0
    %464 = vmatpush.xpose.msra.mxu0 0.0
    %465 = vmatpush.xpose.msra.mxu0 0.0
    %466 = vmatpush.xpose.msra.mxu0 0.0
    %467 = vmatpush.xpose.msra.mxu0 0.0
    %468 = vmatpush.xpose.msra.mxu0 0.0
    %469 = vmatpush.xpose.msra.mxu0 0.0
    %470 = vmatpush.xpose.msra.mxu0 0.0
    %471 = vmatpush.xpose.msra.mxu0 0.0
    %472 = vmatpush.xpose.msra.mxu0 0.0
    %473 = vmatpush.xpose.msra.mxu0 0.0
    %474 = vmatpush.xpose.msra.mxu0 0.0
    %475 = vmatpush.xpose.msra.mxu0 %v458
    %476 = vmatmul.f32.gmra.mxu0 %v456
    %v477 = vpop.f32.mrf.mxu0
    %v478 = vadd.f32 0.0, %v477
    %479 = vdwg.mxu0
    %v480 = vmul.f32 %v450, 0.35355338
    %v481 = vmul.f32 %v478, 0.35355338
    %v482 = vsel %vm106, %v480, -inf
    %483 = vmax.xlane.f32.xlu0 %v482
    %v484 = vpop.xlane.xlu0 %483
    %v485 = vsel %vm106, %v481, -inf
    %486 = vmax.xlane.f32.xlu0 %v485
    %v487 = vpop.xlane.xlu0 %486
    %v488 = vsub.f32 %v480, %v484
    %v489 = vsub.f32 %v481, %v487
    %v490 = vmul.f32 %v488, 1.442695
    %v491 = vpow.pop %v490
    %v492 = vmul.f32 %v489, 1.442695
    %v493 = vpow.pop %v492
    %v494 = vsel %vm106, %v491, 0.0
    %495 = vadd.xlane.f32.xlu0 %v494
    %v496 = vpop.xlane.xlu0 %495
    %v497 = vsel %vm106, %v493, 0.0
    %498 = vadd.xlane.f32.xlu0 %v497
    %v499 = vpop.xlane.xlu0 %498
    %v500 = vrcp.pop %v496
    %v501 = vrcp.pop %v499
    %v502 = vmul.f32 %v491, %v500
    %v503 = vmul.f32 %v493, %v501
    %504 = vrot.lane.b32.xlu0 %v98, 48
    %v505 = vpop.permute.xlu0 %504
    %v508 = vsel %vm106, %v502, 0
    %510 = vmatpush.msra.mxu0 0.0
    %511 = vmatpush.msra.mxu0 0.0
    %512 = vmatpush.msra.mxu0 0.0
    %513 = vmatpush.msra.mxu0 0.0
    %514 = vmatpush.msra.mxu0 0.0
    %515 = vmatpush.msra.mxu0 0.0
    %516 = vmatpush.msra.mxu0 0.0
    %517 = vmatpush.msra.mxu0 0.0
    %518 = vmatpush.msra.mxu0 0.0
    %519 = vmatpush.msra.mxu0 0.0
    %520 = vmatpush.msra.mxu0 0.0
    %521 = vmatpush.msra.mxu0 0.0
    %522 = vmatpush.msra.mxu0 0.0
    %523 = vmatpush.msra.mxu0 0.0
    %524 = vmatpush.msra.mxu0 0.0
    %525 = vmatpush.msra.mxu0 %v505
    %526 = vmatmul.f32.gmra.mxu0 %v508
    %v527 = vpop.f32.mrf.mxu0
    %v528 = vadd.f32 0.0, %v527
    %529 = vdwg.mxu0
    %530 = vrot.lane.b32.xlu0 %v101, 48
    %v531 = vpop.permute.xlu0 %530
    %v534 = vsel %vm106, %v503, 0
    %536 = vmatpush.msra.mxu0 0.0
    %537 = vmatpush.msra.mxu0 0.0
    %538 = vmatpush.msra.mxu0 0.0
    %539 = vmatpush.msra.mxu0 0.0
    %540 = vmatpush.msra.mxu0 0.0
    %541 = vmatpush.msra.mxu0 0.0
    %542 = vmatpush.msra.mxu0 0.0
    %543 = vmatpush.msra.mxu0 0.0
    %544 = vmatpush.msra.mxu0 0.0
    %545 = vmatpush.msra.mxu0 0.0
    %546 = vmatpush.msra.mxu0 0.0
    %547 = vmatpush.msra.mxu0 0.0
    %548 = vmatpush.msra.mxu0 0.0
    %549 = vmatpush.msra.mxu0 0.0
    %550 = vmatpush.msra.mxu0 0.0
    %551 = vmatpush.msra.mxu0 %v531
    %552 = vmatmul.f32.gmra.mxu0 %v534
    %v553 = vpop.f32.mrf.mxu0
    %v554 = vadd.f32 0.0, %v553
    %555 = vdwg.mxu0
    %v557 = vsel %vm106, %v528, 0
    %v560 = vsel %vm106, %v554, 0
    %562 = vmatpush.msra.mxu0 0.0
    %563 = vmatpush.msra.mxu0 0.0
    %564 = vmatpush.msra.mxu0 0.0
    %565 = vmatpush.msra.mxu0 0.0
    %566 = vmatpush.msra.mxu0 0.0
    %567 = vmatpush.msra.mxu0 0.0
    %568 = vmatpush.msra.mxu0 0.0
    %569 = vmatpush.msra.mxu0 0.0
    %570 = vmatpush.msra.mxu0 0.0
    %571 = vmatpush.msra.mxu0 0.0
    %572 = vmatpush.msra.mxu0 0.0
    %573 = vmatpush.msra.mxu0 0.0
    %574 = vmatpush.msra.mxu0 0.0
    %575 = vmatpush.msra.mxu0 0.0
    %576 = vmatpush.msra.mxu0 0.0
    %577 = vmatpush.msra.mxu0 %v67
    %578 = vmatmul.f32.gmra.mxu0 %v557
    %v579 = vpop.f32.mrf.mxu0
    %v580 = vadd.f32 0.0, %v579
    %581 = vmatmul.f32.gmra.mxu0 %v560
    %v582 = vpop.f32.mrf.mxu0
    %v583 = vadd.f32 0.0, %v582
    %584 = vdwg.mxu0
    %v585 = vadd.f32 %v419, %v580
    %v586 = vadd.f32 %v422, %v583
    %587 = vrot.lane.b32.xlu0 %v98, 104
    %v588 = vpop.permute.xlu0 %587
    %589 = vrot.lane.b32.xlu0 %v98, 72
    %v590 = vpop.permute.xlu0 %589
    %v591 = vsel %vm106, %v588, 0
    %v593 = vsel %vm106, %v590, 0
    %595 = vmatpush.xpose.msra.mxu0 0.0
    %596 = vmatpush.xpose.msra.mxu0 0.0
    %597 = vmatpush.xpose.msra.mxu0 0.0
    %598 = vmatpush.xpose.msra.mxu0 0.0
    %599 = vmatpush.xpose.msra.mxu0 0.0
    %600 = vmatpush.xpose.msra.mxu0 0.0
    %601 = vmatpush.xpose.msra.mxu0 0.0
    %602 = vmatpush.xpose.msra.mxu0 0.0
    %603 = vmatpush.xpose.msra.mxu0 0.0
    %604 = vmatpush.xpose.msra.mxu0 0.0
    %605 = vmatpush.xpose.msra.mxu0 0.0
    %606 = vmatpush.xpose.msra.mxu0 0.0
    %607 = vmatpush.xpose.msra.mxu0 0.0
    %608 = vmatpush.xpose.msra.mxu0 0.0
    %609 = vmatpush.xpose.msra.mxu0 0.0
    %610 = vmatpush.xpose.msra.mxu0 %v593
    %611 = vmatmul.f32.gmra.mxu0 %v591
    %v612 = vpop.f32.mrf.mxu0
    %v613 = vadd.f32 0.0, %v612
    %614 = vdwg.mxu0
    %615 = vrot.lane.b32.xlu0 %v101, 104
    %v616 = vpop.permute.xlu0 %615
    %617 = vrot.lane.b32.xlu0 %v101, 72
    %v618 = vpop.permute.xlu0 %617
    %v619 = vsel %vm106, %v616, 0
    %v621 = vsel %vm106, %v618, 0
    %623 = vmatpush.xpose.msra.mxu0 0.0
    %624 = vmatpush.xpose.msra.mxu0 0.0
    %625 = vmatpush.xpose.msra.mxu0 0.0
    %626 = vmatpush.xpose.msra.mxu0 0.0
    %627 = vmatpush.xpose.msra.mxu0 0.0
    %628 = vmatpush.xpose.msra.mxu0 0.0
    %629 = vmatpush.xpose.msra.mxu0 0.0
    %630 = vmatpush.xpose.msra.mxu0 0.0
    %631 = vmatpush.xpose.msra.mxu0 0.0
    %632 = vmatpush.xpose.msra.mxu0 0.0
    %633 = vmatpush.xpose.msra.mxu0 0.0
    %634 = vmatpush.xpose.msra.mxu0 0.0
    %635 = vmatpush.xpose.msra.mxu0 0.0
    %636 = vmatpush.xpose.msra.mxu0 0.0
    %637 = vmatpush.xpose.msra.mxu0 0.0
    %638 = vmatpush.xpose.msra.mxu0 %v621
    %639 = vmatmul.f32.gmra.mxu0 %v619
    %v640 = vpop.f32.mrf.mxu0
    %v641 = vadd.f32 0.0, %v640
    %642 = vdwg.mxu0
    %v643 = vmul.f32 %v613, 0.35355338
    %v644 = vmul.f32 %v641, 0.35355338
    %v645 = vsel %vm106, %v643, -inf
    %646 = vmax.xlane.f32.xlu0 %v645
    %v647 = vpop.xlane.xlu0 %646
    %v648 = vsel %vm106, %v644, -inf
    %649 = vmax.xlane.f32.xlu0 %v648
    %v650 = vpop.xlane.xlu0 %649
    %v651 = vsub.f32 %v643, %v647
    %v652 = vsub.f32 %v644, %v650
    %v653 = vmul.f32 %v651, 1.442695
    %v654 = vpow.pop %v653
    %v655 = vmul.f32 %v652, 1.442695
    %v656 = vpow.pop %v655
    %v657 = vsel %vm106, %v654, 0.0
    %658 = vadd.xlane.f32.xlu0 %v657
    %v659 = vpop.xlane.xlu0 %658
    %v660 = vsel %vm106, %v656, 0.0
    %661 = vadd.xlane.f32.xlu0 %v660
    %v662 = vpop.xlane.xlu0 %661
    %v663 = vrcp.pop %v659
    %v664 = vrcp.pop %v662
    %v665 = vmul.f32 %v654, %v663
    %v666 = vmul.f32 %v656, %v664
    %667 = vrot.lane.b32.xlu0 %v98, 40
    %v668 = vpop.permute.xlu0 %667
    %v671 = vsel %vm106, %v665, 0
    %673 = vmatpush.msra.mxu0 0.0
    %674 = vmatpush.msra.mxu0 0.0
    %675 = vmatpush.msra.mxu0 0.0
    %676 = vmatpush.msra.mxu0 0.0
    %677 = vmatpush.msra.mxu0 0.0
    %678 = vmatpush.msra.mxu0 0.0
    %679 = vmatpush.msra.mxu0 0.0
    %680 = vmatpush.msra.mxu0 0.0
    %681 = vmatpush.msra.mxu0 0.0
    %682 = vmatpush.msra.mxu0 0.0
    %683 = vmatpush.msra.mxu0 0.0
    %684 = vmatpush.msra.mxu0 0.0
    %685 = vmatpush.msra.mxu0 0.0
    %686 = vmatpush.msra.mxu0 0.0
    %687 = vmatpush.msra.mxu0 0.0
    %688 = vmatpush.msra.mxu0 %v668
    %689 = vmatmul.f32.gmra.mxu0 %v671
    %v690 = vpop.f32.mrf.mxu0
    %v691 = vadd.f32 0.0, %v690
    %692 = vdwg.mxu0
    %693 = vrot.lane.b32.xlu0 %v101, 40
    %v694 = vpop.permute.xlu0 %693
    %v697 = vsel %vm106, %v666, 0
    %699 = vmatpush.msra.mxu0 0.0
    %700 = vmatpush.msra.mxu0 0.0
    %701 = vmatpush.msra.mxu0 0.0
    %702 = vmatpush.msra.mxu0 0.0
    %703 = vmatpush.msra.mxu0 0.0
    %704 = vmatpush.msra.mxu0 0.0
    %705 = vmatpush.msra.mxu0 0.0
    %706 = vmatpush.msra.mxu0 0.0
    %707 = vmatpush.msra.mxu0 0.0
    %708 = vmatpush.msra.mxu0 0.0
    %709 = vmatpush.msra.mxu0 0.0
    %710 = vmatpush.msra.mxu0 0.0
    %711 = vmatpush.msra.mxu0 0.0
    %712 = vmatpush.msra.mxu0 0.0
    %713 = vmatpush.msra.mxu0 0.0
    %714 = vmatpush.msra.mxu0 %v694
    %715 = vmatmul.f32.gmra.mxu0 %v697
    %v716 = vpop.f32.mrf.mxu0
    %v717 = vadd.f32 0.0, %v716
    %718 = vdwg.mxu0
    %v720 = vsel %vm106, %v691, 0
    %v723 = vsel %vm106, %v717, 0
    %725 = vmatpush.msra.mxu0 0.0
    %726 = vmatpush.msra.mxu0 0.0
    %727 = vmatpush.msra.mxu0 0.0
    %728 = vmatpush.msra.mxu0 0.0
    %729 = vmatpush.msra.mxu0 0.0
    %730 = vmatpush.msra.mxu0 0.0
    %731 = vmatpush.msra.mxu0 0.0
    %732 = vmatpush.msra.mxu0 0.0
    %733 = vmatpush.msra.mxu0 0.0
    %734 = vmatpush.msra.mxu0 0.0
    %735 = vmatpush.msra.mxu0 0.0
    %736 = vmatpush.msra.mxu0 0.0
    %737 = vmatpush.msra.mxu0 0.0
    %738 = vmatpush.msra.mxu0 0.0
    %739 = vmatpush.msra.mxu0 0.0
    %740 = vmatpush.msra.mxu0 %v68
    %741 = vmatmul.f32.gmra.mxu0 %v720
    %v742 = vpop.f32.mrf.mxu0
    %v743 = vadd.f32 0.0, %v742
    %744 = vmatmul.f32.gmra.mxu0 %v723
    %v745 = vpop.f32.mrf.mxu0
    %v746 = vadd.f32 0.0, %v745
    %747 = vdwg.mxu0
    %v748 = vadd.f32 %v585, %v743
    %v749 = vadd.f32 %v586, %v746
    %v750 = vadd.f32 %v61, %v748
    %v751 = vadd.f32 %v62, %v749
    %v752 = vsel %vm73, %v750, 0.0
    %753 = vadd.xlane.f32.xlu0 %v752
    %v754 = vpop.xlane.xlu0 %753
    %v755 = vsel %vm73, %v751, 0.0
    %756 = vadd.xlane.f32.xlu0 %v755
    %v757 = vpop.xlane.xlu0 %756
    %v758 = vrcp.pop 32.0
    %v759 = vmul.f32 32.0, %v758
    %v760 = vsub.f32 1.0, %v759
    %v761 = vmul.f32 %v758, %v760
    %v762 = vadd.f32 %v758, %v761
    %vm763 = vweird.f32 %v758
    %v764 = vsel %vm763, %v758, %v762
    %v765 = vmul.f32 %v754, %v764
    %v766 = vmul.f32 %v757, %v764
    %v767 = vsub.f32 %v750, %v765
    %v768 = vsub.f32 %v751, %v766
    %v769 = vmul.f32 %v767, %v767
    %v770 = vmul.f32 %v768, %v768
    %v771 = vsel %vm73, %v769, 0.0
    %772 = vadd.xlane.f32.xlu0 %v771
    %v773 = vpop.xlane.xlu0 %772
    %v774 = vsel %vm73, %v770, 0.0
    %775 = vadd.xlane.f32.xlu0 %v774
    %v776 = vpop.xlane.xlu0 %775
    %v777 = vmul.f32 %v773, %v764
    %v778 = vmul.f32 %v776, %v764
    %v779 = vadd.f32 %v777, 1e-05
    %v780 = vadd.f32 %v778, 1e-05
    %v781 = vrsqrt.pop %v779
    %v782 = vmul.f32 %v781, %v779
    %v783 = vmul.f32 %v782, %v781
    %v784 = vmul.f32 0.5, %v783
    %v785 = vsub.f32 1.5, %v784
    %v786 = vmul.f32 %v781, %v785
    %vm787 = vweird.f32 %v779
    %vm788 = vweird.f32 %v781
    %vm789 = vmor %vm787, %vm788
    %v790 = vsel %vm789, %v781, %v786
    %v791 = vrsqrt.pop %v780
    %v792 = vmul.f32 %v791, %v780
    %v793 = vmul.f32 %v792, %v791
    %v794 = vmul.f32 0.5, %v793
    %v795 = vsub.f32 1.5, %v794
    %v796 = vmul.f32 %v791, %v795
    %vm797 = vweird.f32 %v780
    %vm798 = vweird.f32 %v791
    %vm799 = vmor %vm797, %vm798
    %v800 = vsel %vm799, %v791, %v796
    %v801 = vmul.f32 %v767, %v790
    %v802 = vmul.f32 %v768, %v800
    %v803 = vperm.slane %v63, 0
    %v804 = vmul.f32 %v801, %v803
    %v805 = vmul.f32 %v802, %v803
    %v806 = vperm.slane %v63, 1
    %v807 = vadd.f32 %v804, %v806
    %v808 = vadd.f32 %v805, %v806
    %v809 = vld [vmem:[%s3] sm:$0xff]
    %v810 = vld [vmem:[%s3 + $0x8] sm:$0xff]
    %v811 = vld [vmem:[%s3 + $0x10] sm:$0xff]
    %v812 = vld [vmem:[%s3 + $0x18] sm:$0xff]
    %v813 = vperm.slane %v63, 2
    %v815 = vsel %vm73, %v807, 0
    %v818 = vsel %vm73, %v808, 0
    %820 = vmatpush.msra.mxu0 0.0
    %821 = vmatpush.msra.mxu0 0.0
    %822 = vmatpush.msra.mxu0 0.0
    %823 = vmatpush.msra.mxu0 0.0
    %824 = vmatpush.msra.mxu0 0.0
    %825 = vmatpush.msra.mxu0 0.0
    %826 = vmatpush.msra.mxu0 0.0
    %827 = vmatpush.msra.mxu0 0.0
    %828 = vmatpush.msra.mxu0 0.0
    %829 = vmatpush.msra.mxu0 0.0
    %830 = vmatpush.msra.mxu0 0.0
    %831 = vmatpush.msra.mxu0 0.0
    %832 = vmatpush.msra.mxu0 %v812
    %833 = vmatpush.msra.mxu0 %v811
    %834 = vmatpush.msra.mxu0 %v810
    %835 = vmatpush.msra.mxu0 %v809
    %836 = vmatmul.f32.gmra.mxu0 %v815
    %v837 = vpop.f32.mrf.mxu0
    %v838 = vadd.f32 %v813, %v837
    %839 = vmatmul.f32.gmra.mxu0 %v818
    %v840 = vpop.f32.mrf.mxu0
    %v841 = vadd.f32 %v813, %v840
    %842 = vdwg.mxu0
    %v843 = vmax.f32 %v838, 0.0
    %v844 = vmax.f32 %v841, 0.0
    %v845 = vld [vmem:[%s4] sm:$0xff]
    %v846 = vld [vmem:[%s4 + $0x8] sm:$0xff]
    %v847 = vld [vmem:[%s4 + $0x10] sm:$0xff]
    %v848 = vld [vmem:[%s4 + $0x18] sm:$0xff]
    %v849 = vld [vmem:[%s4 + $0x20] sm:$0xff]
    %v850 = vld [vmem:[%s4 + $0x28] sm:$0xff]
    %v851 = vld [vmem:[%s4 + $0x30] sm:$0xff]
    %v852 = vld [vmem:[%s4 + $0x38] sm:$0xff]
    %v853 = vperm.slane %v63, 3
    %vm854 = vcmask 523264
    %v856 = vsel %vm854, %v843, 0
    %v859 = vsel %vm854, %v844, 0
    %861 = vmatpush.msra.mxu0 0.0
    %862 = vmatpush.msra.mxu0 0.0
    %863 = vmatpush.msra.mxu0 0.0
    %864 = vmatpush.msra.mxu0 0.0
    %865 = vmatpush.msra.mxu0 0.0
    %866 = vmatpush.msra.mxu0 0.0
    %867 = vmatpush.msra.mxu0 0.0
    %868 = vmatpush.msra.mxu0 0.0
    %869 = vmatpush.msra.mxu0 %v852
    %870 = vmatpush.msra.mxu0 %v851
    %871 = vmatpush.msra.mxu0 %v850
    %872 = vmatpush.msra.mxu0 %v849
    %873 = vmatpush.msra.mxu0 %v848
    %874 = vmatpush.msra.mxu0 %v847
    %875 = vmatpush.msra.mxu0 %v846
    %876 = vmatpush.msra.mxu0 %v845
    %877 = vmatmul.f32.gmra.mxu0 %v856
    %v878 = vpop.f32.mrf.mxu0
    %v879 = vadd.f32 %v853, %v878
    %880 = vmatmul.f32.gmra.mxu0 %v859
    %v881 = vpop.f32.mrf.mxu0
    %v882 = vadd.f32 %v853, %v881
    %883 = vdwg.mxu0
    %v884 = vadd.f32 %v807, %v879
    %v885 = vadd.f32 %v808, %v882
    %v886 = vsel %vm73, %v884, 0.0
    %887 = vadd.xlane.f32.xlu0 %v886
    %v888 = vpop.xlane.xlu0 %887
    %v889 = vsel %vm73, %v885, 0.0
    %890 = vadd.xlane.f32.xlu0 %v889
    %v891 = vpop.xlane.xlu0 %890
    %v892 = vmul.f32 %v888, %v764
    %v893 = vmul.f32 %v891, %v764
    %v894 = vsub.f32 %v884, %v892
    %v895 = vsub.f32 %v885, %v893
    %v896 = vmul.f32 %v894, %v894
    %v897 = vmul.f32 %v895, %v895
    %v898 = vsel %vm73, %v896, 0.0
    %899 = vadd.xlane.f32.xlu0 %v898
    %v900 = vpop.xlane.xlu0 %899
    %v901 = vsel %vm73, %v897, 0.0
    %902 = vadd.xlane.f32.xlu0 %v901
    %v903 = vpop.xlane.xlu0 %902
    %v904 = vmul.f32 %v900, %v764
    %v905 = vmul.f32 %v903, %v764
    %v906 = vadd.f32 %v904, 1e-05
    %v907 = vadd.f32 %v905, 1e-05
    %v908 = vrsqrt.pop %v906
    %v909 = vmul.f32 %v908, %v906
    %v910 = vmul.f32 %v909, %v908
    %v911 = vmul.f32 0.5, %v910
    %v912 = vsub.f32 1.5, %v911
    %v913 = vmul.f32 %v908, %v912
    %vm914 = vweird.f32 %v906
    %vm915 = vweird.f32 %v908
    %vm916 = vmor %vm914, %vm915
    %v917 = vsel %vm916, %v908, %v913
    %v918 = vrsqrt.pop %v907
    %v919 = vmul.f32 %v918, %v907
    %v920 = vmul.f32 %v919, %v918
    %v921 = vmul.f32 0.5, %v920
    %v922 = vsub.f32 1.5, %v921
    %v923 = vmul.f32 %v918, %v922
    %vm924 = vweird.f32 %v907
    %vm925 = vweird.f32 %v918
    %vm926 = vmor %vm924, %vm925
    %v927 = vsel %vm926, %v918, %v923
    %v928 = vmul.f32 %v894, %v917
    %v929 = vmul.f32 %v895, %v927
    %v930 = vperm.slane %v63, 4
    %v931 = vmul.f32 %v928, %v930
    %v932 = vmul.f32 %v929, %v930
    %v933 = vperm.slane %v63, 5
    %v934 = vadd.f32 %v931, %v933
    %v935 = vadd.f32 %v932, %v933
    %v936 = vsel %vm73, %v934, 0.0
    %v937 = vrot.slane %v936, 4
    %v938 = vadd.f32 %v936, %v937
    %v939 = vrot.slane %v938, 2
    %v940 = vadd.f32 %v938, %v939
    %v941 = vrot.slane %v940, 1
    %v942 = vadd.f32 %v940, %v941
    %v943 = vsel %vm73, %v935, 0.0
    %v944 = vrot.slane %v943, 4
    %v945 = vadd.f32 %v943, %v944
    %v946 = vrot.slane %v945, 2
    %v947 = vadd.f32 %v945, %v946
    %v948 = vrot.slane %v947, 1
    %v949 = vadd.f32 %v947, %v948
    %v950 = vrcp.pop 8.0
    %v951 = vmul.f32 8.0, %v950
    %v952 = vsub.f32 1.0, %v951
    %v953 = vmul.f32 %v950, %v952
    %v954 = vadd.f32 %v950, %v953
    %vm955 = vweird.f32 %v950
    %v956 = vsel %vm955, %v950, %v954
    %v957 = vmul.f32 %v942, %v956
    %v958 = vmul.f32 %v949, %v956
    %v959 = vld [vmem:[%s5] sm:$0xff]
    %v960 = vld [vmem:[%s5 + $0x8] sm:$0xff]
    %v961 = vld [vmem:[%s5 + $0x10] sm:$0xff]
    %v962 = vld [vmem:[%s5 + $0x18] sm:$0xff]
    %v963 = vperm.slane %v63, 6
    %vm966 = vcmask 1041409
    %v967 = vsel %vm966, %v958, %v957
    %v968 = vsel %vm73, %v967, 0
    %970 = vmatpush.msra.mxu0 0.0
    %971 = vmatpush.msra.mxu0 0.0
    %972 = vmatpush.msra.mxu0 0.0
    %973 = vmatpush.msra.mxu0 0.0
    %974 = vmatpush.msra.mxu0 0.0
    %975 = vmatpush.msra.mxu0 0.0
    %976 = vmatpush.msra.mxu0 0.0
    %977 = vmatpush.msra.mxu0 0.0
    %978 = vmatpush.msra.mxu0 0.0
    %979 = vmatpush.msra.mxu0 0.0
    %980 = vmatpush.msra.mxu0 0.0
    %981 = vmatpush.msra.mxu0 0.0
    %982 = vmatpush.msra.mxu0 %v962
    %983 = vmatpush.msra.mxu0 %v961
    %984 = vmatpush.msra.mxu0 %v960
    %985 = vmatpush.msra.mxu0 %v959
    %986 = vmatmul.f32.gmra.mxu0 %v968
    %v987 = vpop.f32.mrf.mxu0
    %v988 = vadd.f32 %v963, %v987
    %989 = vdwg.mxu0
    %v990 = vld [vmem:[#allocation2] sm:$0xff]
    %v991 = vld [vmem:[#allocation2 + $0x8] sm:$0xff]
    %v992 = vperm.slane %v63, 7
    %vm993 = vcmask 130048
    %v995 = vsel %vm993, %v988, 0
    %997 = vmatpush.msra.mxu0 0.0
    %998 = vmatpush.msra.mxu0 0.0
    %999 = vmatpush.msra.mxu0 0.0
    %1000 = vmatpush.msra.mxu0 0.0
    %1001 = vmatpush.msra.mxu0 0.0
    %1002 = vmatpush.msra.mxu0 0.0
    %1003 = vmatpush.msra.mxu0 0.0
    %1004 = vmatpush.msra.mxu0 0.0
    %1005 = vmatpush.msra.mxu0 0.0
    %1006 = vmatpush.msra.mxu0 0.0
    %1007 = vmatpush.msra.mxu0 0.0
    %1008 = vmatpush.msra.mxu0 0.0
    %1009 = vmatpush.msra.mxu0 0.0
    %1010 = vmatpush.msra.mxu0 0.0
    %1011 = vmatpush.msra.mxu0 %v991
    %1012 = vmatpush.msra.mxu0 %v990
    %1013 = vmatmul.f32.gmra.mxu0 %v995
    %v1014 = vpop.f32.mrf.mxu0
    %v1015 = vadd.f32 %v992, %v1014
    %1016 = vdwg.mxu0
    %v1017 = vmax.f32 %v1015, 0.0
    %v1018 = vperm.slane %v64, 0
    %v1019 = vmul.f32 %v1017, %v1018
    %vm1020 = vcmask 254976
    %v1021 = vsel %vm1020, %v1019, 0.0
    %1022 = vadd.xlane.f32.xlu0 %v1021
    %v1023 = vpop.xlane.xlu0 %1022
    %v1024 = vperm.slane %v64, 1
    %v1025 = vadd.f32 %v1023, %v1024
    %vm1026 = vcmask 1024
    %1027 = vst.msk [vmem:[%s8] sm:$0x3] %vm1026, %v1025
    // Predicated region
    $region42: #{tpu_custom_call.1} parent=1 // pred_check
      _
    $region43: #{tpu_custom_call.1} parent=1 // pred_check_branch
      %1029 = sbr.rel (0) target = $region45
    $region44: #{tpu_custom_call.1} parent=1 // pred_region
      _
    $region45: #{tpu_custom_call.1} parent=1 // pred_fallthru
      _
    // Predicated region
    $region46: #{tpu_custom_call.1} parent=1 // pred_check
      _
    $region47: #{tpu_custom_call.1} parent=1 // pred_check_branch
      %1031 = sbr.rel (0) target = $region49
    $region48: #{tpu_custom_call.1} parent=1 // pred_region
      _
    $region49: #{tpu_custom_call.1} parent=1 // pred_fallthru
      _
    %1032 = vsyncpa [#allocation3], 1
    %1033 = vsyncpa [#allocation5], 1

</llo_original>
